<compile_context>
chip_gen: v6e
topology: v6e:2x2x1
jax: 0.10.0
libtpu: 0.0.40
codegen_flags: <defaults>
</compile_context>

<pallas_src>
import functools

import numpy as np
import jax
import jax.numpy as jnp
from jax.experimental import pallas as pl
from jax.experimental.pallas import tpu as pltpu

EPS = 1e-5
LANE = 128  # lane-dense feature width (all layers padded to this)


# ----------------------------------------------------------------------------- kernel
def _make_kernel(n_mats):
    """Kernel for one Net_timestep instance (one grid step).

    Refs:
      s_ref : (B, LANE)            f32   input, features zero-padded to LANE
      w_ref : (n_mats, LANE, LANE) bf16  zero-padded Linear weights (in, out)
      p_ref : (n_rows, LANE)       f32   packed BN gamma/beta + Linear biases
      o_ref : (B, LANE)            f32   output (first nOut cols are valid)
    """

    def batchnorm(x, gamma, beta):
        # training-mode BatchNorm1d, affine folded into one multiply-add.
        mean = jnp.mean(x, axis=0, keepdims=True)
        ex2 = jnp.mean(x * x, axis=0, keepdims=True)
        var = jnp.maximum(ex2 - mean * mean, 0.0)
        scale = gamma * jax.lax.rsqrt(var + EPS)   # rsqrt on EUP slot
        bias = beta - mean * scale
        return x * scale + bias

    def kernel(s_ref, w_ref, p_ref, o_ref):
        x = s_ref[...]                                       # (B, 128) f32

        # i_h leading BN over the input features
        x = batchnorm(x, p_ref[0:1, :], p_ref[1:2, :])

        # n_mats = n_layers + 1 Linear->BN blocks; ReLU on all but the last
        for j in range(n_mats):
            r = 2 + 3 * j
            w = w_ref[j].astype(jnp.float32)                 # bf16 store, f32 math
            x = jnp.dot(x, w, preferred_element_type=jnp.float32)
            x = x + p_ref[r:r + 1, :]                        # Linear bias
            x = batchnorm(x, p_ref[r + 1:r + 2, :], p_ref[r + 2:r + 3, :])
            if j < n_mats - 1:
                x = jnp.maximum(x, 0.0)                      # ReLU

        o_ref[...] = x

    return kernel


# ----------------------------------------------------------------------------- wrapper
@functools.partial(jax.jit, static_argnames=("n_layers", "nOut", "dim"))
def net_timestep_forward(S, w_stack, p_slab, *, n_layers, nOut, dim):
    """S: (n_nets, B, dim) f32 -> (n_nets, B, nOut) f32."""
    n_nets, B, _ = S.shape
    n_mats = n_layers + 1
    n_rows = p_slab.shape[1]
    lane = LANE

    # lane-dense input: zero-pad features to 128 (padded columns stay exactly 0
    # through the whole net because their gamma/beta/bias/weight entries are 0).
    S_pad = jnp.zeros((n_nets, B, lane), jnp.float32).at[:, :, :dim].set(S)

    out = pl.pallas_call(
        _make_kernel(n_mats),
        out_shape=jax.ShapeDtypeStruct((n_nets, B, lane), jnp.float32),
        grid_spec=pltpu.PrefetchScalarGridSpec(
            num_scalar_prefetch=0,
            grid=(n_nets,),
            in_specs=[
                pl.BlockSpec((None, B, lane), lambda i: (i, 0, 0)),
                pl.BlockSpec((None, n_mats, lane, lane), lambda i: (i, 0, 0, 0)),
                pl.BlockSpec((None, n_rows, lane), lambda i: (i, 0, 0)),
            ],
            out_specs=pl.BlockSpec((None, B, lane), lambda i: (i, 0, 0)),
        ),
        compiler_params=pltpu.CompilerParams(
            dimension_semantics=("parallel",),       # v7x: shard nets across TCs
            vmem_limit_bytes=32 * 1024 * 1024,
        ),
    )(S_pad, w_stack, p_slab)

    return out[:, :, :nOut]


# ----------------------------------------------------------------------------- params
def init_net_params(key, dim, nOut, n_layers, vNetWidth):
    """Synthetic parameters for one Net_timestep (shapes match the PyTorch module).

    Returns (bn_in_gamma, bn_in_beta, layers) with layers a list of
    (weight (in,out) f32, bias (out,), bn_gamma (out,), bn_beta (out,)).
    """

    def linear(key, n_in, n_out):
        kw, kb = jax.random.split(key)
        bound = 1.0 / float(np.sqrt(n_in))
        w = jax.random.uniform(kw, (n_in, n_out), jnp.float32, -bound, bound)
        b = jax.random.uniform(kb, (n_out,), jnp.float32, -bound, bound)
        return w, b

    def bn(key, c):
        kg, kb = jax.random.split(key)
        g = 1.0 + 0.1 * jax.random.normal(kg, (c,), jnp.float32)
        b = 0.1 * jax.random.normal(kb, (c,), jnp.float32)
        return g, b

    keys = jax.random.split(key, 2 * (n_layers + 1) + 1)
    ki = iter(keys)

    g0, b0 = bn(next(ki), dim)                       # i_h: BN(dim)
    layers = []
    w, bias = linear(next(ki), dim, vNetWidth)       # i_h: Linear + BN
    g, b = bn(next(ki), vNetWidth)
    layers.append((w, bias, g, b))
    for _ in range(n_layers - 1):                    # h_h
        w, bias = linear(next(ki), vNetWidth, vNetWidth)
        g, b = bn(next(ki), vNetWidth)
        layers.append((w, bias, g, b))
    w, bias = linear(next(ki), vNetWidth, nOut)      # h_o
    g, b = bn(next(ki), nOut)
    layers.append((w, bias, g, b))
    return (g0, b0, layers)


def pack_params(nets, dim, vNetWidth, nOut, n_layers, lane=LANE):
    """Pack per-net params into lane-dense slabs.

    Returns:
      w_stack : (n_nets, n_layers+1, lane, lane) bf16, zero-padded weights.
      p_slab  : (n_nets, n_rows, lane) f32 with rows
                [bn_in_gamma, bn_in_beta] + per layer [bias, bn_gamma, bn_beta].
    """
    n_mats = n_layers + 1
    n_rows = 2 + 3 * n_mats
    n_rows_pad = ((n_rows + 7) // 8) * 8

    w_all, p_all = [], []
    for (g0, b0, layers) in nets:
        rows = np.zeros((n_rows_pad, lane), np.float32)
        rows[0, :dim] = np.asarray(g0)
        rows[1, :dim] = np.asarray(b0)
        ws = []
        for j, (w, bias, g, b) in enumerate(layers):
            w = np.asarray(w, np.float32)
            wpad = np.zeros((lane, lane), np.float32)
            wpad[: w.shape[0], : w.shape[1]] = w
            ws.append(wpad)
            r = 2 + 3 * j
            rows[r, : bias.shape[0]] = np.asarray(bias)
            rows[r + 1, : g.shape[0]] = np.asarray(g)
            rows[r + 2, : b.shape[0]] = np.asarray(b)
        w_all.append(np.stack(ws))
        p_all.append(rows)

    w_stack = jnp.asarray(np.stack(w_all)).astype(jnp.bfloat16)
    p_slab = jnp.asarray(np.stack(p_all), dtype=jnp.float32)
    return w_stack, p_slab


# ----------------------------------------------------------------------------- reference
def reference_forward(S, net_params, n_layers):
    """Plain-JAX reference for one net (PyTorch training-mode semantics), using
    the same bf16-quantized weights as the kernel."""
    g0, b0, layers = net_params

    def bn(x, g, b):
        mean = jnp.mean(x, axis=0, keepdims=True)
        var = jnp.mean((x - mean) ** 2, axis=0, keepdims=True)
        return (x - mean) * jax.lax.rsqrt(var + EPS) * g + b

    x = S.astype(jnp.float32)
    x = bn(x, g0, b0)
    n_mats = len(layers)
    for j, (w, bias, g, b) in enumerate(layers):
        wq = w.astype(jnp.bfloat16).astype(jnp.float32)   # same quantization as kernel
        x = jnp.dot(x, wq, preferred_element_type=jnp.float32) + bias
        x = bn(x, g, b)
        if j < n_mats - 1:
            x = jnp.maximum(x, 0.0)
    return x


# ----------------------------------------------------------------------------- demo
if __name__ == "__main__":
    # Small module-consistent shapes; several independent Net_timestep instances
    # (one per timestep/maturity, as the basket-options code builds them).
    B, dim, nOut, n_layers, vNetWidth = 8, 4, 2, 3, 32
    n_nets = 3

    key = jax.random.PRNGKey(0)
    k_s, *k_nets = jax.random.split(key, 1 + n_nets)

    S = jax.random.normal(k_s, (n_nets, B, dim), dtype=jnp.float32)
    nets = [init_net_params(k, dim, nOut, n_layers, vNetWidth) for k in k_nets]
    w_stack, p_slab = pack_params(nets, dim, vNetWidth, nOut, n_layers)

    out = net_timestep_forward(S, w_stack, p_slab,
                               n_layers=n_layers, nOut=nOut, dim=dim)
    out = jax.block_until_ready(out)
    assert out.shape == (n_nets, B, nOut)

    # Check every net against the plain-JAX (PyTorch-semantics) reference.
    for i in range(n_nets):
        ref = reference_forward(S[i], nets[i], n_layers)
        assert jnp.allclose(out[i], ref, atol=1e-3, rtol=1e-3), (i, out[i], ref)

    # TODO(synk): BatchNorm1d running-mean/var (momentum) buffer updates are a
    # training-time side effect and are not modeled (they do not affect output).
    print("KERNEL_OK")
</pallas_src>

<mosaic_0001>
module attributes {stable_mosaic.version = 11 : i64} {
  func.func @kernel(%arg0: i32, %arg1: memref<1x8x128xf32, #tpu.memory_space<vmem>>, %arg2: memref<1x4x128x128xbf16, #tpu.memory_space<vmem>>, %arg3: memref<1x16x128xf32, #tpu.memory_space<vmem>>, %arg4: memref<1x8x128xf32, #tpu.memory_space<vmem>>) attributes {dimension_semantics = [#tpu.dimension_semantics<parallel>], iteration_bounds = array<i64: 3>, scalar_prefetch = 0 : i64, scratch_operands = 0 : i64, tpu.core_type = #tpu.core_type<tc>, window_params = [{transform_indices = @transform_0, window_bounds = array<i64: 1, 8, 128>}, {transform_indices = @transform_1, window_bounds = array<i64: 1, 4, 128, 128>}, {transform_indices = @transform_2, window_bounds = array<i64: 1, 16, 128>}, {transform_indices = @transform_3, window_bounds = array<i64: 1, 8, 128>}]} {
    %c0 = arith.constant 0 : index
    %c0_0 = arith.constant 0 : index
    %c0_1 = arith.constant 0 : index
    %0 = vector.load %arg1[%c0, %c0_0, %c0_1] : memref<1x8x128xf32, #tpu.memory_space<vmem>>, vector<1x8x128xf32>
    %1 = vector.shape_cast %0 : vector<1x8x128xf32> to vector<8x128xf32>
    %c0_2 = arith.constant 0 : index
    %c0_3 = arith.constant 0 : index
    %c0_4 = arith.constant 0 : index
    %2 = vector.load %arg3[%c0_2, %c0_3, %c0_4] : memref<1x16x128xf32, #tpu.memory_space<vmem>>, vector<1x1x128xf32>
    %3 = vector.shape_cast %2 : vector<1x1x128xf32> to vector<1x128xf32>
    %c0_5 = arith.constant 0 : index
    %c1 = arith.constant 1 : index
    %c0_6 = arith.constant 0 : index
    %4 = vector.load %arg3[%c0_5, %c1, %c0_6] : memref<1x16x128xf32, #tpu.memory_space<vmem>>, vector<1x1x128xf32>
    %5 = vector.shape_cast %4 : vector<1x1x128xf32> to vector<1x128xf32>
    %cst = arith.constant dense<0.000000e+00> : vector<128xf32>
    %6 = vector.multi_reduction <add>, %1, %cst [0] : vector<8x128xf32> to vector<128xf32>
    %7 = vector.shape_cast %6 : vector<128xf32> to vector<1x128xf32>
    %cst_7 = arith.constant 8.000000e+00 : f32
    %8 = vector.broadcast %cst_7 : f32 to vector<1x128xf32>
    %9 = arith.divf %7, %8 : vector<1x128xf32>
    %10 = arith.mulf %1, %1 : vector<8x128xf32>
    %cst_8 = arith.constant dense<0.000000e+00> : vector<128xf32>
    %11 = vector.multi_reduction <add>, %10, %cst_8 [0] : vector<8x128xf32> to vector<128xf32>
    %12 = vector.shape_cast %11 : vector<128xf32> to vector<1x128xf32>
    %cst_9 = arith.constant 8.000000e+00 : f32
    %13 = vector.broadcast %cst_9 : f32 to vector<1x128xf32>
    %14 = arith.divf %12, %13 : vector<1x128xf32>
    %15 = arith.mulf %9, %9 : vector<1x128xf32>
    %16 = arith.subf %14, %15 : vector<1x128xf32>
    %cst_10 = arith.constant 0.000000e+00 : f32
    %17 = vector.broadcast %cst_10 : f32 to vector<1x128xf32>
    %18 = arith.maximumf %16, %17 : vector<1x128xf32>
    %cst_11 = arith.constant 9.99999974E-6 : f32
    %19 = vector.broadcast %cst_11 : f32 to vector<1x128xf32>
    %20 = arith.addf %18, %19 : vector<1x128xf32>
    %21 = math.rsqrt %20 : vector<1x128xf32>
    %22 = arith.mulf %3, %21 : vector<1x128xf32>
    %23 = arith.mulf %9, %22 : vector<1x128xf32>
    %24 = arith.subf %5, %23 : vector<1x128xf32>
    %25 = vector.broadcast %22 : vector<1x128xf32> to vector<8x128xf32>
    %26 = arith.mulf %1, %25 : vector<8x128xf32>
    %27 = vector.broadcast %24 : vector<1x128xf32> to vector<8x128xf32>
    %28 = arith.addf %26, %27 : vector<8x128xf32>
    %c0_12 = arith.constant 0 : index
    %c0_13 = arith.constant 0 : index
    %c0_14 = arith.constant 0 : index
    %c0_15 = arith.constant 0 : index
    %29 = vector.load %arg2[%c0_12, %c0_13, %c0_14, %c0_15] : memref<1x4x128x128xbf16, #tpu.memory_space<vmem>>, vector<1x1x128x128xbf16>
    %30 = vector.shape_cast %29 : vector<1x1x128x128xbf16> to vector<128x128xbf16>
    %31 = arith.extf %30 : vector<128x128xbf16> to vector<128x128xf32>
    %cst_16 = arith.constant dense<0.000000e+00> : vector<8x128xf32>
    %32 = tpu.matmul %28, %31, %cst_16 {dimension_numbers = #tpu.dot_dimension_numbers<[1], [0], [0], [1], [0, 0, 1, 1], [], []>} : vector<8x128xf32>, vector<128x128xf32>, vector<8x128xf32> -> vector<8x128xf32>
    %c0_17 = arith.constant 0 : index
    %c2 = arith.constant 2 : index
    %c0_18 = arith.constant 0 : index
    %33 = vector.load %arg3[%c0_17, %c2, %c0_18] : memref<1x16x128xf32, #tpu.memory_space<vmem>>, vector<1x1x128xf32>
    %34 = vector.shape_cast %33 : vector<1x1x128xf32> to vector<1x128xf32>
    %35 = vector.broadcast %34 : vector<1x128xf32> to vector<8x128xf32>
    %36 = arith.addf %32, %35 : vector<8x128xf32>
    %c0_19 = arith.constant 0 : index
    %c3 = arith.constant 3 : index
    %c0_20 = arith.constant 0 : index
    %37 = vector.load %arg3[%c0_19, %c3, %c0_20] : memref<1x16x128xf32, #tpu.memory_space<vmem>>, vector<1x1x128xf32>
    %38 = vector.shape_cast %37 : vector<1x1x128xf32> to vector<1x128xf32>
    %c0_21 = arith.constant 0 : index
    %c4 = arith.constant 4 : index
    %c0_22 = arith.constant 0 : index
    %39 = vector.load %arg3[%c0_21, %c4, %c0_22] : memref<1x16x128xf32, #tpu.memory_space<vmem>>, vector<1x1x128xf32>
    %40 = vector.shape_cast %39 : vector<1x1x128xf32> to vector<1x128xf32>
    %cst_23 = arith.constant dense<0.000000e+00> : vector<128xf32>
    %41 = vector.multi_reduction <add>, %36, %cst_23 [0] : vector<8x128xf32> to vector<128xf32>
    %42 = vector.shape_cast %41 : vector<128xf32> to vector<1x128xf32>
    %cst_24 = arith.constant 8.000000e+00 : f32
    %43 = vector.broadcast %cst_24 : f32 to vector<1x128xf32>
    %44 = arith.divf %42, %43 : vector<1x128xf32>
    %45 = arith.mulf %36, %36 : vector<8x128xf32>
    %cst_25 = arith.constant dense<0.000000e+00> : vector<128xf32>
    %46 = vector.multi_reduction <add>, %45, %cst_25 [0] : vector<8x128xf32> to vector<128xf32>
    %47 = vector.shape_cast %46 : vector<128xf32> to vector<1x128xf32>
    %cst_26 = arith.constant 8.000000e+00 : f32
    %48 = vector.broadcast %cst_26 : f32 to vector<1x128xf32>
    %49 = arith.divf %47, %48 : vector<1x128xf32>
    %50 = arith.mulf %44, %44 : vector<1x128xf32>
    %51 = arith.subf %49, %50 : vector<1x128xf32>
    %cst_27 = arith.constant 0.000000e+00 : f32
    %52 = vector.broadcast %cst_27 : f32 to vector<1x128xf32>
    %53 = arith.maximumf %51, %52 : vector<1x128xf32>
    %cst_28 = arith.constant 9.99999974E-6 : f32
    %54 = vector.broadcast %cst_28 : f32 to vector<1x128xf32>
    %55 = arith.addf %53, %54 : vector<1x128xf32>
    %56 = math.rsqrt %55 : vector<1x128xf32>
    %57 = arith.mulf %38, %56 : vector<1x128xf32>
    %58 = arith.mulf %44, %57 : vector<1x128xf32>
    %59 = arith.subf %40, %58 : vector<1x128xf32>
    %60 = vector.broadcast %57 : vector<1x128xf32> to vector<8x128xf32>
    %61 = arith.mulf %36, %60 : vector<8x128xf32>
    %62 = vector.broadcast %59 : vector<1x128xf32> to vector<8x128xf32>
    %63 = arith.addf %61, %62 : vector<8x128xf32>
    %cst_29 = arith.constant 0.000000e+00 : f32
    %64 = vector.broadcast %cst_29 : f32 to vector<8x128xf32>
    %65 = arith.maximumf %63, %64 : vector<8x128xf32>
    %c0_30 = arith.constant 0 : index
    %c1_31 = arith.constant 1 : index
    %c0_32 = arith.constant 0 : index
    %c0_33 = arith.constant 0 : index
    %66 = vector.load %arg2[%c0_30, %c1_31, %c0_32, %c0_33] : memref<1x4x128x128xbf16, #tpu.memory_space<vmem>>, vector<1x1x128x128xbf16>
    %67 = vector.shape_cast %66 : vector<1x1x128x128xbf16> to vector<128x128xbf16>
    %68 = arith.extf %67 : vector<128x128xbf16> to vector<128x128xf32>
    %cst_34 = arith.constant dense<0.000000e+00> : vector<8x128xf32>
    %69 = tpu.matmul %65, %68, %cst_34 {dimension_numbers = #tpu.dot_dimension_numbers<[1], [0], [0], [1], [0, 0, 1, 1], [], []>} : vector<8x128xf32>, vector<128x128xf32>, vector<8x128xf32> -> vector<8x128xf32>
    %c0_35 = arith.constant 0 : index
    %c5 = arith.constant 5 : index
    %c0_36 = arith.constant 0 : index
    %70 = vector.load %arg3[%c0_35, %c5, %c0_36] : memref<1x16x128xf32, #tpu.memory_space<vmem>>, vector<1x1x128xf32>
    %71 = vector.shape_cast %70 : vector<1x1x128xf32> to vector<1x128xf32>
    %72 = vector.broadcast %71 : vector<1x128xf32> to vector<8x128xf32>
    %73 = arith.addf %69, %72 : vector<8x128xf32>
    %c0_37 = arith.constant 0 : index
    %c6 = arith.constant 6 : index
    %c0_38 = arith.constant 0 : index
    %74 = vector.load %arg3[%c0_37, %c6, %c0_38] : memref<1x16x128xf32, #tpu.memory_space<vmem>>, vector<1x1x128xf32>
    %75 = vector.shape_cast %74 : vector<1x1x128xf32> to vector<1x128xf32>
    %c0_39 = arith.constant 0 : index
    %c7 = arith.constant 7 : index
    %c0_40 = arith.constant 0 : index
    %76 = vector.load %arg3[%c0_39, %c7, %c0_40] : memref<1x16x128xf32, #tpu.memory_space<vmem>>, vector<1x1x128xf32>
    %77 = vector.shape_cast %76 : vector<1x1x128xf32> to vector<1x128xf32>
    %cst_41 = arith.constant dense<0.000000e+00> : vector<128xf32>
    %78 = vector.multi_reduction <add>, %73, %cst_41 [0] : vector<8x128xf32> to vector<128xf32>
    %79 = vector.shape_cast %78 : vector<128xf32> to vector<1x128xf32>
    %cst_42 = arith.constant 8.000000e+00 : f32
    %80 = vector.broadcast %cst_42 : f32 to vector<1x128xf32>
    %81 = arith.divf %79, %80 : vector<1x128xf32>
    %82 = arith.mulf %73, %73 : vector<8x128xf32>
    %cst_43 = arith.constant dense<0.000000e+00> : vector<128xf32>
    %83 = vector.multi_reduction <add>, %82, %cst_43 [0] : vector<8x128xf32> to vector<128xf32>
    %84 = vector.shape_cast %83 : vector<128xf32> to vector<1x128xf32>
    %cst_44 = arith.constant 8.000000e+00 : f32
    %85 = vector.broadcast %cst_44 : f32 to vector<1x128xf32>
    %86 = arith.divf %84, %85 : vector<1x128xf32>
    %87 = arith.mulf %81, %81 : vector<1x128xf32>
    %88 = arith.subf %86, %87 : vector<1x128xf32>
    %cst_45 = arith.constant 0.000000e+00 : f32
    %89 = vector.broadcast %cst_45 : f32 to vector<1x128xf32>
    %90 = arith.maximumf %88, %89 : vector<1x128xf32>
    %cst_46 = arith.constant 9.99999974E-6 : f32
    %91 = vector.broadcast %cst_46 : f32 to vector<1x128xf32>
    %92 = arith.addf %90, %91 : vector<1x128xf32>
    %93 = math.rsqrt %92 : vector<1x128xf32>
    %94 = arith.mulf %75, %93 : vector<1x128xf32>
    %95 = arith.mulf %81, %94 : vector<1x128xf32>
    %96 = arith.subf %77, %95 : vector<1x128xf32>
    %97 = vector.broadcast %94 : vector<1x128xf32> to vector<8x128xf32>
    %98 = arith.mulf %73, %97 : vector<8x128xf32>
    %99 = vector.broadcast %96 : vector<1x128xf32> to vector<8x128xf32>
    %100 = arith.addf %98, %99 : vector<8x128xf32>
    %cst_47 = arith.constant 0.000000e+00 : f32
    %101 = vector.broadcast %cst_47 : f32 to vector<8x128xf32>
    %102 = arith.maximumf %100, %101 : vector<8x128xf32>
    %c0_48 = arith.constant 0 : index
    %c2_49 = arith.constant 2 : index
    %c0_50 = arith.constant 0 : index
    %c0_51 = arith.constant 0 : index
    %103 = vector.load %arg2[%c0_48, %c2_49, %c0_50, %c0_51] : memref<1x4x128x128xbf16, #tpu.memory_space<vmem>>, vector<1x1x128x128xbf16>
    %104 = vector.shape_cast %103 : vector<1x1x128x128xbf16> to vector<128x128xbf16>
    %105 = arith.extf %104 : vector<128x128xbf16> to vector<128x128xf32>
    %cst_52 = arith.constant dense<0.000000e+00> : vector<8x128xf32>
    %106 = tpu.matmul %102, %105, %cst_52 {dimension_numbers = #tpu.dot_dimension_numbers<[1], [0], [0], [1], [0, 0, 1, 1], [], []>} : vector<8x128xf32>, vector<128x128xf32>, vector<8x128xf32> -> vector<8x128xf32>
    %c0_53 = arith.constant 0 : index
    %c8 = arith.constant 8 : index
    %c0_54 = arith.constant 0 : index
    %107 = vector.load %arg3[%c0_53, %c8, %c0_54] : memref<1x16x128xf32, #tpu.memory_space<vmem>>, vector<1x1x128xf32>
    %108 = vector.shape_cast %107 : vector<1x1x128xf32> to vector<1x128xf32>
    %109 = vector.broadcast %108 : vector<1x128xf32> to vector<8x128xf32>
    %110 = arith.addf %106, %109 : vector<8x128xf32>
    %c0_55 = arith.constant 0 : index
    %c9 = arith.constant 9 : index
    %c0_56 = arith.constant 0 : index
    %111 = vector.load %arg3[%c0_55, %c9, %c0_56] : memref<1x16x128xf32, #tpu.memory_space<vmem>>, vector<1x1x128xf32>
    %112 = vector.shape_cast %111 : vector<1x1x128xf32> to vector<1x128xf32>
    %c0_57 = arith.constant 0 : index
    %c10 = arith.constant 10 : index
    %c0_58 = arith.constant 0 : index
    %113 = vector.load %arg3[%c0_57, %c10, %c0_58] : memref<1x16x128xf32, #tpu.memory_space<vmem>>, vector<1x1x128xf32>
    %114 = vector.shape_cast %113 : vector<1x1x128xf32> to vector<1x128xf32>
    %cst_59 = arith.constant dense<0.000000e+00> : vector<128xf32>
    %115 = vector.multi_reduction <add>, %110, %cst_59 [0] : vector<8x128xf32> to vector<128xf32>
    %116 = vector.shape_cast %115 : vector<128xf32> to vector<1x128xf32>
    %cst_60 = arith.constant 8.000000e+00 : f32
    %117 = vector.broadcast %cst_60 : f32 to vector<1x128xf32>
    %118 = arith.divf %116, %117 : vector<1x128xf32>
    %119 = arith.mulf %110, %110 : vector<8x128xf32>
    %cst_61 = arith.constant dense<0.000000e+00> : vector<128xf32>
    %120 = vector.multi_reduction <add>, %119, %cst_61 [0] : vector<8x128xf32> to vector<128xf32>
    %121 = vector.shape_cast %120 : vector<128xf32> to vector<1x128xf32>
    %cst_62 = arith.constant 8.000000e+00 : f32
    %122 = vector.broadcast %cst_62 : f32 to vector<1x128xf32>
    %123 = arith.divf %121, %122 : vector<1x128xf32>
    %124 = arith.mulf %118, %118 : vector<1x128xf32>
    %125 = arith.subf %123, %124 : vector<1x128xf32>
    %cst_63 = arith.constant 0.000000e+00 : f32
    %126 = vector.broadcast %cst_63 : f32 to vector<1x128xf32>
    %127 = arith.maximumf %125, %126 : vector<1x128xf32>
    %cst_64 = arith.constant 9.99999974E-6 : f32
    %128 = vector.broadcast %cst_64 : f32 to vector<1x128xf32>
    %129 = arith.addf %127, %128 : vector<1x128xf32>
    %130 = math.rsqrt %129 : vector<1x128xf32>
    %131 = arith.mulf %112, %130 : vector<1x128xf32>
    %132 = arith.mulf %118, %131 : vector<1x128xf32>
    %133 = arith.subf %114, %132 : vector<1x128xf32>
    %134 = vector.broadcast %131 : vector<1x128xf32> to vector<8x128xf32>
    %135 = arith.mulf %110, %134 : vector<8x128xf32>
    %136 = vector.broadcast %133 : vector<1x128xf32> to vector<8x128xf32>
    %137 = arith.addf %135, %136 : vector<8x128xf32>
    %cst_65 = arith.constant 0.000000e+00 : f32
    %138 = vector.broadcast %cst_65 : f32 to vector<8x128xf32>
    %139 = arith.maximumf %137, %138 : vector<8x128xf32>
    %c0_66 = arith.constant 0 : index
    %c3_67 = arith.constant 3 : index
    %c0_68 = arith.constant 0 : index
    %c0_69 = arith.constant 0 : index
    %140 = vector.load %arg2[%c0_66, %c3_67, %c0_68, %c0_69] : memref<1x4x128x128xbf16, #tpu.memory_space<vmem>>, vector<1x1x128x128xbf16>
    %141 = vector.shape_cast %140 : vector<1x1x128x128xbf16> to vector<128x128xbf16>
    %142 = arith.extf %141 : vector<128x128xbf16> to vector<128x128xf32>
    %cst_70 = arith.constant dense<0.000000e+00> : vector<8x128xf32>
    %143 = tpu.matmul %139, %142, %cst_70 {dimension_numbers = #tpu.dot_dimension_numbers<[1], [0], [0], [1], [0, 0, 1, 1], [], []>} : vector<8x128xf32>, vector<128x128xf32>, vector<8x128xf32> -> vector<8x128xf32>
    %c0_71 = arith.constant 0 : index
    %c11 = arith.constant 11 : index
    %c0_72 = arith.constant 0 : index
    %144 = vector.load %arg3[%c0_71, %c11, %c0_72] : memref<1x16x128xf32, #tpu.memory_space<vmem>>, vector<1x1x128xf32>
    %145 = vector.shape_cast %144 : vector<1x1x128xf32> to vector<1x128xf32>
    %146 = vector.broadcast %145 : vector<1x128xf32> to vector<8x128xf32>
    %147 = arith.addf %143, %146 : vector<8x128xf32>
    %c0_73 = arith.constant 0 : index
    %c12 = arith.constant 12 : index
    %c0_74 = arith.constant 0 : index
    %148 = vector.load %arg3[%c0_73, %c12, %c0_74] : memref<1x16x128xf32, #tpu.memory_space<vmem>>, vector<1x1x128xf32>
    %149 = vector.shape_cast %148 : vector<1x1x128xf32> to vector<1x128xf32>
    %c0_75 = arith.constant 0 : index
    %c13 = arith.constant 13 : index
    %c0_76 = arith.constant 0 : index
    %150 = vector.load %arg3[%c0_75, %c13, %c0_76] : memref<1x16x128xf32, #tpu.memory_space<vmem>>, vector<1x1x128xf32>
    %151 = vector.shape_cast %150 : vector<1x1x128xf32> to vector<1x128xf32>
    %cst_77 = arith.constant dense<0.000000e+00> : vector<128xf32>
    %152 = vector.multi_reduction <add>, %147, %cst_77 [0] : vector<8x128xf32> to vector<128xf32>
    %153 = vector.shape_cast %152 : vector<128xf32> to vector<1x128xf32>
    %cst_78 = arith.constant 8.000000e+00 : f32
    %154 = vector.broadcast %cst_78 : f32 to vector<1x128xf32>
    %155 = arith.divf %153, %154 : vector<1x128xf32>
    %156 = arith.mulf %147, %147 : vector<8x128xf32>
    %cst_79 = arith.constant dense<0.000000e+00> : vector<128xf32>
    %157 = vector.multi_reduction <add>, %156, %cst_79 [0] : vector<8x128xf32> to vector<128xf32>
    %158 = vector.shape_cast %157 : vector<128xf32> to vector<1x128xf32>
    %cst_80 = arith.constant 8.000000e+00 : f32
    %159 = vector.broadcast %cst_80 : f32 to vector<1x128xf32>
    %160 = arith.divf %158, %159 : vector<1x128xf32>
    %161 = arith.mulf %155, %155 : vector<1x128xf32>
    %162 = arith.subf %160, %161 : vector<1x128xf32>
    %cst_81 = arith.constant 0.000000e+00 : f32
    %163 = vector.broadcast %cst_81 : f32 to vector<1x128xf32>
    %164 = arith.maximumf %162, %163 : vector<1x128xf32>
    %cst_82 = arith.constant 9.99999974E-6 : f32
    %165 = vector.broadcast %cst_82 : f32 to vector<1x128xf32>
    %166 = arith.addf %164, %165 : vector<1x128xf32>
    %167 = math.rsqrt %166 : vector<1x128xf32>
    %168 = arith.mulf %149, %167 : vector<1x128xf32>
    %169 = arith.mulf %155, %168 : vector<1x128xf32>
    %170 = arith.subf %151, %169 : vector<1x128xf32>
    %171 = vector.broadcast %168 : vector<1x128xf32> to vector<8x128xf32>
    %172 = arith.mulf %147, %171 : vector<8x128xf32>
    %173 = vector.broadcast %170 : vector<1x128xf32> to vector<8x128xf32>
    %174 = arith.addf %172, %173 : vector<8x128xf32>
    %c0_83 = arith.constant 0 : index
    %c0_84 = arith.constant 0 : index
    %c0_85 = arith.constant 0 : index
    %175 = vector.load %arg4[%c0_83, %c0_84, %c0_85] : memref<1x8x128xf32, #tpu.memory_space<vmem>>, vector<1x8x128xf32>
    %176 = vector.shape_cast %175 : vector<1x8x128xf32> to vector<8x128xf32>
    %177 = vector.shape_cast %174 : vector<8x128xf32> to vector<1x8x128xf32>
    tpu.vector_store %arg4[%c0_83, %c0_84, %c0_85], %177 {strides = array<i32>} : memref<1x8x128xf32, #tpu.memory_space<vmem>>, vector<1x8x128xf32>,
    return
  }
  func.func @transform_0(%arg0: i32) -> (i32, i32, i32) {
    %c0_i32 = arith.constant 0 : i32
    %c0_i32_0 = arith.constant 0 : i32
    %c0_i32_1 = arith.constant 0 : i32
    return %arg0, %c0_i32, %c0_i32_0 : i32, i32, i32
  }
  func.func @transform_1(%arg0: i32) -> (i32, i32, i32, i32) {
    %c0_i32 = arith.constant 0 : i32
    %c0_i32_0 = arith.constant 0 : i32
    %c0_i32_1 = arith.constant 0 : i32
    %c0_i32_2 = arith.constant 0 : i32
    return %arg0, %c0_i32, %c0_i32_0, %c0_i32_1 : i32, i32, i32, i32
  }
  func.func @transform_2(%arg0: i32) -> (i32, i32, i32) {
    %c0_i32 = arith.constant 0 : i32
    %c0_i32_0 = arith.constant 0 : i32
    %c0_i32_1 = arith.constant 0 : i32
    return %arg0, %c0_i32, %c0_i32_0 : i32, i32, i32
  }
  func.func @transform_3(%arg0: i32) -> (i32, i32, i32) {
    %c0_i32 = arith.constant 0 : i32
    %c0_i32_0 = arith.constant 0 : i32
    %c0_i32_1 = arith.constant 0 : i32
    return %arg0, %c0_i32, %c0_i32_0 : i32, i32, i32
  }
}

</mosaic_0001>

<llo_original>
// kernel: net_timestep_forward.1
$region0: #{net_timestep_forward.1}
  #allocation0 [shape = 'u32[]', space=smem, size = 0x4, offset = 0x4, fixed_abs, tag = 'smem constant byte address 0x4 - core index']
  #allocation1 [shape = 'u32[144,128]{1,0:T(1,128)}', space=vmem, size = 0x12000, scoped, tag = 'internal scratch']
  %s0 = inlined_call_operand.vmem [shape: f32[3,8,128], index: 0, kind: input, shape index: {}]
  %s1 = inlined_call_operand.hbm [shape: bf16[3,4,128,128], index: 1, kind: input, shape index: {}]
  %s2 = inlined_call_operand.vmem [shape: f32[3,16,128], index: 2, kind: input, shape index: {}]
  %s3 = inlined_call_operand.vmem [shape: f32[3,8,128], index: 3, kind: output, shape index: {}]
  %s4 = sld [smem:[#allocation0]]
  $region49: #{net_timestep_forward.1} parent=0
    _
  %s6 = ssub.s32 1, %s4
  %s7 = scalar_select 0, %s6, %s4
  $region1: #{net_timestep_forward.1} parent=0
    #allocation2 [shape = 'u8[262144]{0}', space=vmem, size = 0x40000, scoped, tag = 'input window, operand 1']
    #allocation3 [shape = 's32[2]{0}', space=sflag, size = 0x8, scoped, tag = 'scoped memory for net_timestep_forward.1']
    %8 = vsyncpa [#allocation3], 0
    %s9 = scalar_lea.sflag [#allocation3], 1
    %10 = vsyncpa %s9, 0
    loop: start=0, step=1, limit=5
    $region2: #{net_timestep_forward.1} parent=1 // loop_pre_header
      _
    $region3: #{net_timestep_forward.1} parent=1 // loop_header
      %s12 = sphi 0, %s16
      %p13 = scmp.ge.s32.totalorder %s12, 5
      %s22 = sphi 0, %s24
      %s25 = sphi 0, %s22
      %s26 = sphi 0, %s25
      %s42 = sphi 0, %s26
      %s48 = sphi 0, %s50
      %s51 = sphi 0, %s48
      %s52 = sphi 0, %s51
      %s68 = sphi 0, %s52
      %s74 = sphi 0, %s76
      %s77 = sphi 0, %s74
      %s78 = sphi 0, %s77
      %s94 = sphi 0, %s78
      %s100 = sphi 0, %s102
      %s103 = sphi 0, %s100
      %s104 = sphi 0, %s103
      %s120 = sphi 0, %s104
    $region4: #{net_timestep_forward.1} parent=1 // loop_header_branch
      %15 = sbr.rel (%p13) target = $region8
    $region5: #{net_timestep_forward.1} parent=1 // loop_body
      %s17 = ssub.s32 %s12, 1
      %s18 = ssub.s32 %s12, 2
      %s19 = sadd.s32 %s12, 1
      %s20 = ssub.s32 %s12, %s19
      %p21 = scmp.eq.s32.totalorder %s20, 0
      %s23 = sadd.s32 %s22, 1
      %s24 = scalar_select %p21, %s22, %s23
      %p27 = pneg %p21
      %p28 = scmp.eq.s32.totalorder %s12, 2
      %p29 = por %p27, %p28
      %p30 = scmp.ne.s32.totalorder %s22, %s25
      %p31 = scmp.eq.s32.totalorder %s12, 0
      %p32 = por %p30, %p31
      %p33 = scmp.ne.s32.totalorder %s22, %s25
      %p34 = scmp.eq.s32.totalorder %s17, 2
      %p35 = por %p33, %p34
      %p36 = scmp.ne.s32.totalorder %s25, %s26
      %p37 = scmp.eq.s32.totalorder %s17, 0
      %p38 = por %p36, %p37
      %p39 = scmp.ne.s32.totalorder %s25, %s26
      %p40 = scmp.eq.s32.totalorder %s18, 2
      %p41 = por %p39, %p40
      %p43 = scmp.ne.s32.totalorder %s26, %s42
      %p44 = scmp.eq.s32.totalorder %s18, 0
      %p45 = por %p43, %p44
      %s46 = ssub.s32 %s12, %s19
      %p47 = scmp.eq.s32.totalorder %s46, 0
      %s49 = sadd.s32 %s48, 1
      %s50 = scalar_select %p47, %s48, %s49
      %p53 = pneg %p47
      %p54 = scmp.eq.s32.totalorder %s12, 2
      %p55 = por %p53, %p54
      %p56 = scmp.ne.s32.totalorder %s48, %s51
      %p57 = scmp.eq.s32.totalorder %s12, 0
      %p58 = por %p56, %p57
      %p59 = scmp.ne.s32.totalorder %s48, %s51
      %p60 = scmp.eq.s32.totalorder %s17, 2
      %p61 = por %p59, %p60
      %p62 = scmp.ne.s32.totalorder %s51, %s52
      %p63 = scmp.eq.s32.totalorder %s17, 0
      %p64 = por %p62, %p63
      %p65 = scmp.ne.s32.totalorder %s51, %s52
      %p66 = scmp.eq.s32.totalorder %s18, 2
      %p67 = por %p65, %p66
      %p69 = scmp.ne.s32.totalorder %s52, %s68
      %p70 = scmp.eq.s32.totalorder %s18, 0
      %p71 = por %p69, %p70
      %s72 = ssub.s32 %s12, %s19
      %p73 = scmp.eq.s32.totalorder %s72, 0
      %s75 = sadd.s32 %s74, 1
      %s76 = scalar_select %p73, %s74, %s75
      %p79 = pneg %p73
      %p80 = scmp.eq.s32.totalorder %s12, 2
      %p81 = por %p79, %p80
      %p82 = scmp.ne.s32.totalorder %s74, %s77
      %p83 = scmp.eq.s32.totalorder %s12, 0
      %p84 = por %p82, %p83
      %p85 = scmp.ne.s32.totalorder %s74, %s77
      %p86 = scmp.eq.s32.totalorder %s17, 2
      %p87 = por %p85, %p86
      %p88 = scmp.ne.s32.totalorder %s77, %s78
      %p89 = scmp.eq.s32.totalorder %s17, 0
      %p90 = por %p88, %p89
      %p91 = scmp.ne.s32.totalorder %s77, %s78
      %p92 = scmp.eq.s32.totalorder %s18, 2
      %p93 = por %p91, %p92
      %p95 = scmp.ne.s32.totalorder %s78, %s94
      %p96 = scmp.eq.s32.totalorder %s18, 0
      %p97 = por %p95, %p96
      %s98 = ssub.s32 %s12, %s19
      %p99 = scmp.eq.s32.totalorder %s98, 0
      %s101 = sadd.s32 %s100, 1
      %s102 = scalar_select %p99, %s100, %s101
      %p105 = pneg %p99
      %p106 = scmp.eq.s32.totalorder %s12, 2
      %p107 = por %p105, %p106
      %p108 = scmp.ne.s32.totalorder %s100, %s103
      %p109 = scmp.eq.s32.totalorder %s12, 0
      %p110 = por %p108, %p109
      %p111 = scmp.ne.s32.totalorder %s100, %s103
      %p112 = scmp.eq.s32.totalorder %s17, 2
      %p113 = por %p111, %p112
      %p114 = scmp.ne.s32.totalorder %s103, %s104
      %p115 = scmp.eq.s32.totalorder %s17, 0
      %p116 = por %p114, %p115
      %p117 = scmp.ne.s32.totalorder %s103, %s104
      %p118 = scmp.eq.s32.totalorder %s18, 2
      %p119 = por %p117, %p118
      %p121 = scmp.ne.s32.totalorder %s104, %s120
      %p122 = scmp.eq.s32.totalorder %s18, 0
      %p123 = por %p121, %p122
      %p124 = scmp.le.s32.totalorder 1, %s12
      %p125 = scmp.lt.s32.totalorder %s12, 4
      %p126 = pnand %p124, %p125
      %p127 = pneg %p126
      // Predicated region
      $region9: #{net_timestep_forward.1} parent=5 // pred_check
        _
      $region10: #{net_timestep_forward.1} parent=5 // pred_check_branch
        %129 = sbr.rel (%p126) target = $region12
      $region11: #{net_timestep_forward.1} parent=5 // pred_region
        %s130 = ssub.s32 %s12, 1
      $region12: #{net_timestep_forward.1} parent=5 // pred_fallthru
        _
      %p131 = scmp.lt.s32.totalorder %s12, 3
      // Predicated region
      $region13: #{net_timestep_forward.1} parent=5 // pred_check
        %p132 = pneg %p131
      $region14: #{net_timestep_forward.1} parent=5 // pred_check_branch
        %134 = sbr.rel (%p132) target = $region16
      $region15: #{net_timestep_forward.1} parent=5 // pred_region
        // Predicated region
        $region17: #{net_timestep_forward.1} parent=15 // pred_check
          %p135 = pneg %p32
        $region18: #{net_timestep_forward.1} parent=15 // pred_check_branch
          %137 = sbr.rel (%p135) target = $region20
        $region19: #{net_timestep_forward.1} parent=15 // pred_region
          %p138 = scmp.lt.s32.totalorder %s12, 2
          %s139 = scalar_select %p138, %s12, 2
          %s140 = smul.addr %s139, 8
          %s141 = scalar_lea.vmem %s0, %s140
        $region20: #{net_timestep_forward.1} parent=15 // pred_fallthru
          _
        // Predicated region
        $region21: #{net_timestep_forward.1} parent=15 // pred_check
          %p142 = pneg %p58
        $region22: #{net_timestep_forward.1} parent=15 // pred_check_branch
          %144 = sbr.rel (%p142) target = $region24
        $region23: #{net_timestep_forward.1} parent=15 // pred_region
          %s145 = sand.u32 %s48, 1
          %s146 = scalar_lea.sflag [#allocation3], %s145
          %s147 = sand.u32 %s48, 1
          %s148 = smul.addr %s147, 256
          %s149 = scalar_lea.vmem [#allocation2], %s148
          %s151 = ssub.s32 4096, 4096
          %152 = vsyncadd %s146, %s151
          %s153 = smul.addr %s12, 64
          %s154 = smul.addr %s153, 64
          %s155 = scalar_lea.hbm %s1, %s154
          %s156 = sshll.u32 %s149, 4
          %s157 = int_to_ptr.vmem [resolvable:$true] %s156
          %162 = dma.hbm_to_vmem [thread:$0]  %s155, 4096, %s157, %s146, 64, 64, 4
        $region24: #{net_timestep_forward.1} parent=15 // pred_fallthru
          _
        // Predicated region
        $region25: #{net_timestep_forward.1} parent=15 // pred_check
          %p163 = pneg %p84
        $region26: #{net_timestep_forward.1} parent=15 // pred_check_branch
          %165 = sbr.rel (%p163) target = $region28
        $region27: #{net_timestep_forward.1} parent=15 // pred_region
          %p166 = scmp.lt.s32.totalorder %s12, 2
          %s167 = scalar_select %p166, %s12, 2
          %s168 = smul.addr %s167, 2
          %s169 = smul.addr %s168, 8
          %s170 = scalar_lea.vmem %s2, %s169
        $region28: #{net_timestep_forward.1} parent=15 // pred_fallthru
          _
      $region16: #{net_timestep_forward.1} parent=5 // pred_fallthru
        _
      %p171 = scmp.le.s32.totalorder 1, %s12
      %p172 = scmp.lt.s32.totalorder %s12, 4
      %p173 = pnand %p171, %p172
      %p174 = pneg %p173
      // Predicated region
      $region29: #{net_timestep_forward.1} parent=5 // pred_check
        _
      $region30: #{net_timestep_forward.1} parent=5 // pred_check_branch
        %176 = sbr.rel (%p173) target = $region32
      $region31: #{net_timestep_forward.1} parent=5 // pred_region
        %s177 = ssub.s32 %s12, 1
        %s178 = sand.u32 %s51, 1
        %s179 = scalar_lea.sflag [#allocation3], %s178
        %s180 = sand.u32 %s51, 1
        %s181 = smul.addr %s180, 256
        %s182 = scalar_lea.vmem [#allocation2], %s181
        // Predicated region
        $region33: #{net_timestep_forward.1} parent=31 // pred_check
          %p183 = pneg %p64
        $region34: #{net_timestep_forward.1} parent=31 // pred_check_branch
          %185 = sbr.rel (%p183) target = $region36
        $region35: #{net_timestep_forward.1} parent=31 // pred_region
          %186 = dma.done %s179, 4096
        $region36: #{net_timestep_forward.1} parent=31 // pred_fallthru
          _
        %p187 = scmp.lt.s32.totalorder %s17, 2
        %s188 = scalar_select %p187, %s17, 2
        %s189 = smul.addr %s188, 8
        %s190 = scalar_lea.vmem %s0, %s189
        %p191 = pneg %p38
        %p192 = pneg %p35
        %s193 = sand.u32 %s51, 1
        %s194 = scalar_lea.sflag [#allocation3], %s193
        %s195 = sand.u32 %s51, 1
        %s196 = smul.addr %s195, 256
        %s197 = scalar_lea.vmem [#allocation2], %s196
        %p198 = pneg %p64
        %p199 = pneg %p61
        %p200 = scmp.lt.s32.totalorder %s17, 2
        %s201 = scalar_select %p200, %s17, 2
        %s202 = smul.addr %s201, 2
        %s203 = smul.addr %s202, 8
        %s204 = scalar_lea.vmem %s2, %s203
        %p205 = pneg %p90
        %p206 = pneg %p87
        %p207 = pneg %p116
        %p208 = pneg %p113
        %p209 = scmp.lt.s32.totalorder %s17, 2
        %s210 = scalar_select %p209, %s17, 2
        %s211 = smul.addr %s210, 8
        %s212 = scalar_lea.vmem %s3, %s211
        %p213 = scmp.lt.s32.totalorder %s17, 2
        %s214 = scalar_select %p213, %s17, 2
        %s215 = smul.addr %s214, 8
        %s216 = scalar_lea.vmem %s0, %s215
        %p217 = scmp.lt.s32.totalorder %s17, 2
        %s218 = scalar_select %p217, %s17, 2
        %s219 = smul.addr %s218, 2
        %s220 = smul.addr %s219, 8
        %s221 = scalar_lea.vmem %s2, %s220
        %p222 = scmp.lt.s32.totalorder %s17, 2
        %s223 = scalar_select %p222, %s17, 2
        %s224 = smul.addr %s223, 8
        %s225 = scalar_lea.vmem %s3, %s224
        %v226 = vld [vmem:[%s216] sm:$0xff]
        %v227 = vld [vmem:[%s221] sm:$0x1]
        %v228 = vld [vmem:[%s221 + $0x1] sm:$0x1]
        %v229 = vrot.slane %v226, 4
        %v230 = vadd.f32 %v226, %v229
        %v231 = vrot.slane %v230, 2
        %v232 = vadd.f32 %v230, %v231
        %v233 = vrot.slane %v232, 1
        %v234 = vadd.f32 %v232, %v233
        %v235 = vrcp.pop 8.0
        %v236 = vmul.f32 %v234, %v235
        %v237 = vmul.f32 %v226, %v226
        %v238 = vrot.slane %v237, 4
        %v239 = vadd.f32 %v237, %v238
        %v240 = vrot.slane %v239, 2
        %v241 = vadd.f32 %v239, %v240
        %v242 = vrot.slane %v241, 1
        %v243 = vadd.f32 %v241, %v242
        %v244 = vmul.f32 %v243, %v235
        %v245 = vmul.f32 %v236, %v236
        %v246 = vsub.f32 %v244, %v245
        %v247 = vmax.f32 %v246, 0.0
        %v248 = vadd.f32 %v247, 1e-05
        %v249 = vrsqrt.pop %v248
        %v250 = vmul.f32 %v227, %v249
        %v251 = vmul.f32 %v236, %v250
        %v252 = vsub.f32 %v228, %v251
        %v253 = vlaneseq
        %v254 = vshrl.u32 %v253, 7
        %v255 = vsub.s32 0, %v254
        %v256 = vrot.slane %v250, %v255
        %v257 = vmul.f32 %v226, %v256
        %v258 = vlaneseq
        %v259 = vshrl.u32 %v258, 7
        %v260 = vsub.s32 0, %v259
        %v261 = vrot.slane %v252, %v260
        %v262 = vadd.f32 %v257, %v261
        %v263 = vld [vmem:[%s182] sm:$0xf]
        %v264 = vld [vmem:[%s182 + $0x4] sm:$0xf]
        %v265 = vld [vmem:[%s182 + $0x8] sm:$0xf]
        %v266 = vld [vmem:[%s182 + $0xc] sm:$0xf]
        %v267 = vld [vmem:[%s182 + $0x10] sm:$0xf]
        %v268 = vld [vmem:[%s182 + $0x14] sm:$0xf]
        %v269 = vld [vmem:[%s182 + $0x18] sm:$0xf]
        %v270 = vld [vmem:[%s182 + $0x1c] sm:$0xf]
        %v271 = vld [vmem:[%s182 + $0x20] sm:$0xf]
        %v272 = vld [vmem:[%s182 + $0x24] sm:$0xf]
        %v273 = vld [vmem:[%s182 + $0x28] sm:$0xf]
        %v274 = vld [vmem:[%s182 + $0x2c] sm:$0xf]
        %v275 = vld [vmem:[%s182 + $0x30] sm:$0xf]
        %v276 = vld [vmem:[%s182 + $0x34] sm:$0xf]
        %v277 = vld [vmem:[%s182 + $0x38] sm:$0xf]
        %v278 = vld [vmem:[%s182 + $0x3c] sm:$0xf]
        %v279 = vunpack.c.l.bf16 %v263
        %v280 = vunpack.c.l.bf16 %v264
        %v281 = vunpack.c.l.bf16 %v265
        %v282 = vunpack.c.l.bf16 %v266
        %v283 = vunpack.c.l.bf16 %v267
        %v284 = vunpack.c.l.bf16 %v268
        %v285 = vunpack.c.l.bf16 %v269
        %v286 = vunpack.c.l.bf16 %v270
        %v287 = vunpack.c.l.bf16 %v271
        %v288 = vunpack.c.l.bf16 %v272
        %v289 = vunpack.c.l.bf16 %v273
        %v290 = vunpack.c.l.bf16 %v274
        %v291 = vunpack.c.l.bf16 %v275
        %v292 = vunpack.c.l.bf16 %v276
        %v293 = vunpack.c.l.bf16 %v277
        %v294 = vunpack.c.l.bf16 %v278
        %v295 = vld [vmem:[%s221 + $0x2] sm:$0x1]
        %v296 = vlaneseq
        %v297 = vshrl.u32 %v296, 7
        %v298 = vsub.s32 0, %v297
        %v299 = vrot.slane %v295, %v298
        %300 = vmatprep.subr.mxu0 0.0
        %301 = vmatpush1.msra.mxu0 %v294
        %302 = vmatprep.subr.mxu0 0.0
        %303 = vmatpush1.msra.mxu0 %v293
        %304 = vmatprep.subr.mxu0 0.0
        %305 = vmatpush1.msra.mxu0 %v292
        %306 = vmatprep.subr.mxu0 0.0
        %307 = vmatpush1.msra.mxu0 %v291
        %308 = vmatprep.subr.mxu0 0.0
        %309 = vmatpush1.msra.mxu0 %v290
        %310 = vmatprep.subr.mxu0 0.0
        %311 = vmatpush1.msra.mxu0 %v289
        %312 = vmatprep.subr.mxu0 0.0
        %313 = vmatpush1.msra.mxu0 %v288
        %314 = vmatprep.subr.mxu0 0.0
        %315 = vmatpush1.msra.mxu0 %v287
        %316 = vmatprep.subr.mxu0 0.0
        %317 = vmatpush1.msra.mxu0 %v286
        %318 = vmatprep.subr.mxu0 0.0
        %319 = vmatpush1.msra.mxu0 %v285
        %320 = vmatprep.subr.mxu0 0.0
        %321 = vmatpush1.msra.mxu0 %v284
        %322 = vmatprep.subr.mxu0 0.0
        %323 = vmatpush1.msra.mxu0 %v283
        %324 = vmatprep.subr.mxu0 0.0
        %325 = vmatpush1.msra.mxu0 %v282
        %326 = vmatprep.subr.mxu0 0.0
        %327 = vmatpush1.msra.mxu0 %v281
        %328 = vmatprep.subr.mxu0 0.0
        %329 = vmatpush1.msra.mxu0 %v280
        %330 = vmatprep.subr.mxu0 0.0
        %331 = vmatpush1.msra.mxu0 %v279
        %332 = vmatprep.subr.mxu0 0.0
        %333 = vmatpush2.msra.mxu0 0.0
        %334 = vmatprep.subr.mxu0 0.0
        %335 = vmatpush2.msra.mxu0 0.0
        %336 = vmatprep.subr.mxu0 0.0
        %337 = vmatpush2.msra.mxu0 0.0
        %338 = vmatprep.subr.mxu0 0.0
        %339 = vmatpush2.msra.mxu0 0.0
        %340 = vmatprep.subr.mxu0 0.0
        %341 = vmatpush2.msra.mxu0 0.0
        %342 = vmatprep.subr.mxu0 0.0
        %343 = vmatpush2.msra.mxu0 0.0
        %344 = vmatprep.subr.mxu0 0.0
        %345 = vmatpush2.msra.mxu0 0.0
        %346 = vmatprep.subr.mxu0 0.0
        %347 = vmatpush2.msra.mxu0 0.0
        %348 = vmatprep.subr.mxu0 0.0
        %349 = vmatpush2.msra.mxu0 0.0
        %350 = vmatprep.subr.mxu0 0.0
        %351 = vmatpush2.msra.mxu0 0.0
        %352 = vmatprep.subr.mxu0 0.0
        %353 = vmatpush2.msra.mxu0 0.0
        %354 = vmatprep.subr.mxu0 0.0
        %355 = vmatpush2.msra.mxu0 0.0
        %356 = vmatprep.subr.mxu0 0.0
        %357 = vmatpush2.msra.mxu0 0.0
        %358 = vmatprep.subr.mxu0 0.0
        %359 = vmatpush2.msra.mxu0 0.0
        %360 = vmatprep.subr.mxu0 0.0
        %361 = vmatpush2.msra.mxu0 0.0
        %362 = vmatprep.subr.mxu0 0.0
        %363 = vmatpush2.msra.mxu0 0.0
        %364 = vmatprep.mubr.f32.mxu0 0.0
        %365 = vmatmul.mubr.f32.gmra.mxu0 %v262
        %v366 = vpop.f32.mrf.mxu0
        %v367 = vadd.f32 %v299, %v366
        %v368 = vpop.f32.mrf.mxu0
        %369 = vdwg.mxu0
        %v370 = vld [vmem:[%s221 + $0x3] sm:$0x1]
        %v371 = vld [vmem:[%s221 + $0x4] sm:$0x1]
        %v372 = vrot.slane %v367, 4
        %v373 = vadd.f32 %v367, %v372
        %v374 = vrot.slane %v373, 2
        %v375 = vadd.f32 %v373, %v374
        %v376 = vrot.slane %v375, 1
        %v377 = vadd.f32 %v375, %v376
        %v378 = vmul.f32 %v377, %v235
        %v379 = vmul.f32 %v367, %v367
        %v380 = vrot.slane %v379, 4
        %v381 = vadd.f32 %v379, %v380
        %v382 = vrot.slane %v381, 2
        %v383 = vadd.f32 %v381, %v382
        %v384 = vrot.slane %v383, 1
        %v385 = vadd.f32 %v383, %v384
        %v386 = vmul.f32 %v385, %v235
        %v387 = vmul.f32 %v378, %v378
        %v388 = vsub.f32 %v386, %v387
        %v389 = vmax.f32 %v388, 0.0
        %v390 = vadd.f32 %v389, 1e-05
        %v391 = vrsqrt.pop %v390
        %v392 = vmul.f32 %v370, %v391
        %v393 = vmul.f32 %v378, %v392
        %v394 = vsub.f32 %v371, %v393
        %v395 = vlaneseq
        %v396 = vshrl.u32 %v395, 7
        %v397 = vsub.s32 0, %v396
        %v398 = vrot.slane %v392, %v397
        %v399 = vmul.f32 %v367, %v398
        %v400 = vlaneseq
        %v401 = vshrl.u32 %v400, 7
        %v402 = vsub.s32 0, %v401
        %v403 = vrot.slane %v394, %v402
        %v404 = vadd.f32 %v399, %v403
        %v405 = vmax.f32 %v404, 0.0
        %s406 = scalar_lea.vmem %s182, 64 [#allocation2]
        %v407 = vld [vmem:[%s406] sm:$0xf]
        %v408 = vld [vmem:[%s406 + $0x4] sm:$0xf]
        %v409 = vld [vmem:[%s406 + $0x8] sm:$0xf]
        %v410 = vld [vmem:[%s406 + $0xc] sm:$0xf]
        %v411 = vld [vmem:[%s406 + $0x10] sm:$0xf]
        %v412 = vld [vmem:[%s406 + $0x14] sm:$0xf]
        %v413 = vld [vmem:[%s406 + $0x18] sm:$0xf]
        %v414 = vld [vmem:[%s406 + $0x1c] sm:$0xf]
        %v415 = vld [vmem:[%s406 + $0x20] sm:$0xf]
        %v416 = vld [vmem:[%s406 + $0x24] sm:$0xf]
        %v417 = vld [vmem:[%s406 + $0x28] sm:$0xf]
        %v418 = vld [vmem:[%s406 + $0x2c] sm:$0xf]
        %v419 = vld [vmem:[%s406 + $0x30] sm:$0xf]
        %v420 = vld [vmem:[%s406 + $0x34] sm:$0xf]
        %v421 = vld [vmem:[%s406 + $0x38] sm:$0xf]
        %v422 = vld [vmem:[%s406 + $0x3c] sm:$0xf]
        %v423 = vunpack.c.l.bf16 %v407
        %v424 = vunpack.c.l.bf16 %v408
        %v425 = vunpack.c.l.bf16 %v409
        %v426 = vunpack.c.l.bf16 %v410
        %v427 = vunpack.c.l.bf16 %v411
        %v428 = vunpack.c.l.bf16 %v412
        %v429 = vunpack.c.l.bf16 %v413
        %v430 = vunpack.c.l.bf16 %v414
        %v431 = vunpack.c.l.bf16 %v415
        %v432 = vunpack.c.l.bf16 %v416
        %v433 = vunpack.c.l.bf16 %v417
        %v434 = vunpack.c.l.bf16 %v418
        %v435 = vunpack.c.l.bf16 %v419
        %v436 = vunpack.c.l.bf16 %v420
        %v437 = vunpack.c.l.bf16 %v421
        %v438 = vunpack.c.l.bf16 %v422
        %v439 = vld [vmem:[%s221 + $0x5] sm:$0x1]
        %v440 = vlaneseq
        %v441 = vshrl.u32 %v440, 7
        %v442 = vsub.s32 0, %v441
        %v443 = vrot.slane %v439, %v442
        %444 = vmatprep.subr.mxu0 0.0
        %445 = vmatpush1.msra.mxu0 %v438
        %446 = vmatprep.subr.mxu0 0.0
        %447 = vmatpush1.msra.mxu0 %v437
        %448 = vmatprep.subr.mxu0 0.0
        %449 = vmatpush1.msra.mxu0 %v436
        %450 = vmatprep.subr.mxu0 0.0
        %451 = vmatpush1.msra.mxu0 %v435
        %452 = vmatprep.subr.mxu0 0.0
        %453 = vmatpush1.msra.mxu0 %v434
        %454 = vmatprep.subr.mxu0 0.0
        %455 = vmatpush1.msra.mxu0 %v433
        %456 = vmatprep.subr.mxu0 0.0
        %457 = vmatpush1.msra.mxu0 %v432
        %458 = vmatprep.subr.mxu0 0.0
        %459 = vmatpush1.msra.mxu0 %v431
        %460 = vmatprep.subr.mxu0 0.0
        %461 = vmatpush1.msra.mxu0 %v430
        %462 = vmatprep.subr.mxu0 0.0
        %463 = vmatpush1.msra.mxu0 %v429
        %464 = vmatprep.subr.mxu0 0.0
        %465 = vmatpush1.msra.mxu0 %v428
        %466 = vmatprep.subr.mxu0 0.0
        %467 = vmatpush1.msra.mxu0 %v427
        %468 = vmatprep.subr.mxu0 0.0
        %469 = vmatpush1.msra.mxu0 %v426
        %470 = vmatprep.subr.mxu0 0.0
        %471 = vmatpush1.msra.mxu0 %v425
        %472 = vmatprep.subr.mxu0 0.0
        %473 = vmatpush1.msra.mxu0 %v424
        %474 = vmatprep.subr.mxu0 0.0
        %475 = vmatpush1.msra.mxu0 %v423
        %476 = vmatprep.subr.mxu0 0.0
        %477 = vmatpush2.msra.mxu0 0.0
        %478 = vmatprep.subr.mxu0 0.0
        %479 = vmatpush2.msra.mxu0 0.0
        %480 = vmatprep.subr.mxu0 0.0
        %481 = vmatpush2.msra.mxu0 0.0
        %482 = vmatprep.subr.mxu0 0.0
        %483 = vmatpush2.msra.mxu0 0.0
        %484 = vmatprep.subr.mxu0 0.0
        %485 = vmatpush2.msra.mxu0 0.0
        %486 = vmatprep.subr.mxu0 0.0
        %487 = vmatpush2.msra.mxu0 0.0
        %488 = vmatprep.subr.mxu0 0.0
        %489 = vmatpush2.msra.mxu0 0.0
        %490 = vmatprep.subr.mxu0 0.0
        %491 = vmatpush2.msra.mxu0 0.0
        %492 = vmatprep.subr.mxu0 0.0
        %493 = vmatpush2.msra.mxu0 0.0
        %494 = vmatprep.subr.mxu0 0.0
        %495 = vmatpush2.msra.mxu0 0.0
        %496 = vmatprep.subr.mxu0 0.0
        %497 = vmatpush2.msra.mxu0 0.0
        %498 = vmatprep.subr.mxu0 0.0
        %499 = vmatpush2.msra.mxu0 0.0
        %500 = vmatprep.subr.mxu0 0.0
        %501 = vmatpush2.msra.mxu0 0.0
        %502 = vmatprep.subr.mxu0 0.0
        %503 = vmatpush2.msra.mxu0 0.0
        %504 = vmatprep.subr.mxu0 0.0
        %505 = vmatpush2.msra.mxu0 0.0
        %506 = vmatprep.subr.mxu0 0.0
        %507 = vmatpush2.msra.mxu0 0.0
        %508 = vmatprep.mubr.f32.mxu0 0.0
        %509 = vmatmul.mubr.f32.gmra.mxu0 %v405
        %v510 = vpop.f32.mrf.mxu0
        %v511 = vadd.f32 %v443, %v510
        %v512 = vpop.f32.mrf.mxu0
        %513 = vdwg.mxu0
        %v514 = vld [vmem:[%s221 + $0x6] sm:$0x1]
        %v515 = vld [vmem:[%s221 + $0x7] sm:$0x1]
        %v516 = vrot.slane %v511, 4
        %v517 = vadd.f32 %v511, %v516
        %v518 = vrot.slane %v517, 2
        %v519 = vadd.f32 %v517, %v518
        %v520 = vrot.slane %v519, 1
        %v521 = vadd.f32 %v519, %v520
        %v522 = vmul.f32 %v521, %v235
        %v523 = vmul.f32 %v511, %v511
        %v524 = vrot.slane %v523, 4
        %v525 = vadd.f32 %v523, %v524
        %v526 = vrot.slane %v525, 2
        %v527 = vadd.f32 %v525, %v526
        %v528 = vrot.slane %v527, 1
        %v529 = vadd.f32 %v527, %v528
        %v530 = vmul.f32 %v529, %v235
        %v531 = vmul.f32 %v522, %v522
        %v532 = vsub.f32 %v530, %v531
        %v533 = vmax.f32 %v532, 0.0
        %v534 = vadd.f32 %v533, 1e-05
        %v535 = vrsqrt.pop %v534
        %v536 = vmul.f32 %v514, %v535
        %v537 = vmul.f32 %v522, %v536
        %v538 = vsub.f32 %v515, %v537
        %v539 = vlaneseq
        %v540 = vshrl.u32 %v539, 7
        %v541 = vsub.s32 0, %v540
        %v542 = vrot.slane %v536, %v541
        %v543 = vmul.f32 %v511, %v542
        %v544 = vlaneseq
        %v545 = vshrl.u32 %v544, 7
        %v546 = vsub.s32 0, %v545
        %v547 = vrot.slane %v538, %v546
        %v548 = vadd.f32 %v543, %v547
        %v549 = vmax.f32 %v548, 0.0
        %s550 = scalar_lea.vmem %s182, 128 [#allocation2]
        %v551 = vld [vmem:[%s550] sm:$0xf]
        %v552 = vld [vmem:[%s550 + $0x4] sm:$0xf]
        %v553 = vld [vmem:[%s550 + $0x8] sm:$0xf]
        %v554 = vld [vmem:[%s550 + $0xc] sm:$0xf]
        %v555 = vld [vmem:[%s550 + $0x10] sm:$0xf]
        %v556 = vld [vmem:[%s550 + $0x14] sm:$0xf]
        %v557 = vld [vmem:[%s550 + $0x18] sm:$0xf]
        %v558 = vld [vmem:[%s550 + $0x1c] sm:$0xf]
        %v559 = vld [vmem:[%s550 + $0x20] sm:$0xf]
        %v560 = vld [vmem:[%s550 + $0x24] sm:$0xf]
        %v561 = vld [vmem:[%s550 + $0x28] sm:$0xf]
        %v562 = vld [vmem:[%s550 + $0x2c] sm:$0xf]
        %v563 = vld [vmem:[%s550 + $0x30] sm:$0xf]
        %v564 = vld [vmem:[%s550 + $0x34] sm:$0xf]
        %v565 = vld [vmem:[%s550 + $0x38] sm:$0xf]
        %v566 = vld [vmem:[%s550 + $0x3c] sm:$0xf]
        %v567 = vunpack.c.l.bf16 %v551
        %v568 = vunpack.c.l.bf16 %v552
        %v569 = vunpack.c.l.bf16 %v553
        %v570 = vunpack.c.l.bf16 %v554
        %v571 = vunpack.c.l.bf16 %v555
        %v572 = vunpack.c.l.bf16 %v556
        %v573 = vunpack.c.l.bf16 %v557
        %v574 = vunpack.c.l.bf16 %v558
        %v575 = vunpack.c.l.bf16 %v559
        %v576 = vunpack.c.l.bf16 %v560
        %v577 = vunpack.c.l.bf16 %v561
        %v578 = vunpack.c.l.bf16 %v562
        %v579 = vunpack.c.l.bf16 %v563
        %v580 = vunpack.c.l.bf16 %v564
        %v581 = vunpack.c.l.bf16 %v565
        %v582 = vunpack.c.l.bf16 %v566
        %v583 = vld [vmem:[%s221 + $0x8] sm:$0x1]
        %v584 = vlaneseq
        %v585 = vshrl.u32 %v584, 7
        %v586 = vsub.s32 0, %v585
        %v587 = vrot.slane %v583, %v586
        %588 = vmatprep.subr.mxu0 0.0
        %589 = vmatpush1.msra.mxu0 %v582
        %590 = vmatprep.subr.mxu0 0.0
        %591 = vmatpush1.msra.mxu0 %v581
        %592 = vmatprep.subr.mxu0 0.0
        %593 = vmatpush1.msra.mxu0 %v580
        %594 = vmatprep.subr.mxu0 0.0
        %595 = vmatpush1.msra.mxu0 %v579
        %596 = vmatprep.subr.mxu0 0.0
        %597 = vmatpush1.msra.mxu0 %v578
        %598 = vmatprep.subr.mxu0 0.0
        %599 = vmatpush1.msra.mxu0 %v577
        %600 = vmatprep.subr.mxu0 0.0
        %601 = vmatpush1.msra.mxu0 %v576
        %602 = vmatprep.subr.mxu0 0.0
        %603 = vmatpush1.msra.mxu0 %v575
        %604 = vmatprep.subr.mxu0 0.0
        %605 = vmatpush1.msra.mxu0 %v574
        %606 = vmatprep.subr.mxu0 0.0
        %607 = vmatpush1.msra.mxu0 %v573
        %608 = vmatprep.subr.mxu0 0.0
        %609 = vmatpush1.msra.mxu0 %v572
        %610 = vmatprep.subr.mxu0 0.0
        %611 = vmatpush1.msra.mxu0 %v571
        %612 = vmatprep.subr.mxu0 0.0
        %613 = vmatpush1.msra.mxu0 %v570
        %614 = vmatprep.subr.mxu0 0.0
        %615 = vmatpush1.msra.mxu0 %v569
        %616 = vmatprep.subr.mxu0 0.0
        %617 = vmatpush1.msra.mxu0 %v568
        %618 = vmatprep.subr.mxu0 0.0
        %619 = vmatpush1.msra.mxu0 %v567
        %620 = vmatprep.subr.mxu0 0.0
        %621 = vmatpush2.msra.mxu0 0.0
        %622 = vmatprep.subr.mxu0 0.0
        %623 = vmatpush2.msra.mxu0 0.0
        %624 = vmatprep.subr.mxu0 0.0
        %625 = vmatpush2.msra.mxu0 0.0
        %626 = vmatprep.subr.mxu0 0.0
        %627 = vmatpush2.msra.mxu0 0.0
        %628 = vmatprep.subr.mxu0 0.0
        %629 = vmatpush2.msra.mxu0 0.0
        %630 = vmatprep.subr.mxu0 0.0
        %631 = vmatpush2.msra.mxu0 0.0
        %632 = vmatprep.subr.mxu0 0.0
        %633 = vmatpush2.msra.mxu0 0.0
        %634 = vmatprep.subr.mxu0 0.0
        %635 = vmatpush2.msra.mxu0 0.0
        %636 = vmatprep.subr.mxu0 0.0
        %637 = vmatpush2.msra.mxu0 0.0
        %638 = vmatprep.subr.mxu0 0.0
        %639 = vmatpush2.msra.mxu0 0.0
        %640 = vmatprep.subr.mxu0 0.0
        %641 = vmatpush2.msra.mxu0 0.0
        %642 = vmatprep.subr.mxu0 0.0
        %643 = vmatpush2.msra.mxu0 0.0
        %644 = vmatprep.subr.mxu0 0.0
        %645 = vmatpush2.msra.mxu0 0.0
        %646 = vmatprep.subr.mxu0 0.0
        %647 = vmatpush2.msra.mxu0 0.0
        %648 = vmatprep.subr.mxu0 0.0
        %649 = vmatpush2.msra.mxu0 0.0
        %650 = vmatprep.subr.mxu0 0.0
        %651 = vmatpush2.msra.mxu0 0.0
        %652 = vmatprep.mubr.f32.mxu0 0.0
        %653 = vmatmul.mubr.f32.gmra.mxu0 %v549
        %v654 = vpop.f32.mrf.mxu0
        %v655 = vadd.f32 %v587, %v654
        %v656 = vpop.f32.mrf.mxu0
        %657 = vdwg.mxu0
        %v658 = vld [vmem:[%s221 + $0x9] sm:$0x1]
        %v659 = vld [vmem:[%s221 + $0xa] sm:$0x1]
        %v660 = vrot.slane %v655, 4
        %v661 = vadd.f32 %v655, %v660
        %v662 = vrot.slane %v661, 2
        %v663 = vadd.f32 %v661, %v662
        %v664 = vrot.slane %v663, 1
        %v665 = vadd.f32 %v663, %v664
        %v666 = vmul.f32 %v665, %v235
        %v667 = vmul.f32 %v655, %v655
        %v668 = vrot.slane %v667, 4
        %v669 = vadd.f32 %v667, %v668
        %v670 = vrot.slane %v669, 2
        %v671 = vadd.f32 %v669, %v670
        %v672 = vrot.slane %v671, 1
        %v673 = vadd.f32 %v671, %v672
        %v674 = vmul.f32 %v673, %v235
        %v675 = vmul.f32 %v666, %v666
        %v676 = vsub.f32 %v674, %v675
        %v677 = vmax.f32 %v676, 0.0
        %v678 = vadd.f32 %v677, 1e-05
        %v679 = vrsqrt.pop %v678
        %v680 = vmul.f32 %v658, %v679
        %v681 = vmul.f32 %v666, %v680
        %v682 = vsub.f32 %v659, %v681
        %v683 = vlaneseq
        %v684 = vshrl.u32 %v683, 7
        %v685 = vsub.s32 0, %v684
        %v686 = vrot.slane %v680, %v685
        %v687 = vmul.f32 %v655, %v686
        %v688 = vlaneseq
        %v689 = vshrl.u32 %v688, 7
        %v690 = vsub.s32 0, %v689
        %v691 = vrot.slane %v682, %v690
        %v692 = vadd.f32 %v687, %v691
        %v693 = vmax.f32 %v692, 0.0
        %s694 = scalar_lea.vmem %s182, 192 [#allocation2]
        %v695 = vld [vmem:[%s694] sm:$0xf]
        %v696 = vld [vmem:[%s694 + $0x4] sm:$0xf]
        %v697 = vld [vmem:[%s694 + $0x8] sm:$0xf]
        %v698 = vld [vmem:[%s694 + $0xc] sm:$0xf]
        %v699 = vld [vmem:[%s694 + $0x10] sm:$0xf]
        %v700 = vld [vmem:[%s694 + $0x14] sm:$0xf]
        %v701 = vld [vmem:[%s694 + $0x18] sm:$0xf]
        %v702 = vld [vmem:[%s694 + $0x1c] sm:$0xf]
        %v703 = vld [vmem:[%s694 + $0x20] sm:$0xf]
        %v704 = vld [vmem:[%s694 + $0x24] sm:$0xf]
        %v705 = vld [vmem:[%s694 + $0x28] sm:$0xf]
        %v706 = vld [vmem:[%s694 + $0x2c] sm:$0xf]
        %v707 = vld [vmem:[%s694 + $0x30] sm:$0xf]
        %v708 = vld [vmem:[%s694 + $0x34] sm:$0xf]
        %v709 = vld [vmem:[%s694 + $0x38] sm:$0xf]
        %v710 = vld [vmem:[%s694 + $0x3c] sm:$0xf]
        %v711 = vunpack.c.l.bf16 %v695
        %v712 = vunpack.c.l.bf16 %v696
        %v713 = vunpack.c.l.bf16 %v697
        %v714 = vunpack.c.l.bf16 %v698
        %v715 = vunpack.c.l.bf16 %v699
        %v716 = vunpack.c.l.bf16 %v700
        %v717 = vunpack.c.l.bf16 %v701
        %v718 = vunpack.c.l.bf16 %v702
        %v719 = vunpack.c.l.bf16 %v703
        %v720 = vunpack.c.l.bf16 %v704
        %v721 = vunpack.c.l.bf16 %v705
        %v722 = vunpack.c.l.bf16 %v706
        %v723 = vunpack.c.l.bf16 %v707
        %v724 = vunpack.c.l.bf16 %v708
        %v725 = vunpack.c.l.bf16 %v709
        %v726 = vunpack.c.l.bf16 %v710
        %v727 = vld [vmem:[%s221 + $0xb] sm:$0x1]
        %v728 = vlaneseq
        %v729 = vshrl.u32 %v728, 7
        %v730 = vsub.s32 0, %v729
        %v731 = vrot.slane %v727, %v730
        %732 = vmatprep.subr.mxu0 0.0
        %733 = vmatpush1.msra.mxu0 %v726
        %734 = vmatprep.subr.mxu0 0.0
        %735 = vmatpush1.msra.mxu0 %v725
        %736 = vmatprep.subr.mxu0 0.0
        %737 = vmatpush1.msra.mxu0 %v724
        %738 = vmatprep.subr.mxu0 0.0
        %739 = vmatpush1.msra.mxu0 %v723
        %740 = vmatprep.subr.mxu0 0.0
        %741 = vmatpush1.msra.mxu0 %v722
        %742 = vmatprep.subr.mxu0 0.0
        %743 = vmatpush1.msra.mxu0 %v721
        %744 = vmatprep.subr.mxu0 0.0
        %745 = vmatpush1.msra.mxu0 %v720
        %746 = vmatprep.subr.mxu0 0.0
        %747 = vmatpush1.msra.mxu0 %v719
        %748 = vmatprep.subr.mxu0 0.0
        %749 = vmatpush1.msra.mxu0 %v718
        %750 = vmatprep.subr.mxu0 0.0
        %751 = vmatpush1.msra.mxu0 %v717
        %752 = vmatprep.subr.mxu0 0.0
        %753 = vmatpush1.msra.mxu0 %v716
        %754 = vmatprep.subr.mxu0 0.0
        %755 = vmatpush1.msra.mxu0 %v715
        %756 = vmatprep.subr.mxu0 0.0
        %757 = vmatpush1.msra.mxu0 %v714
        %758 = vmatprep.subr.mxu0 0.0
        %759 = vmatpush1.msra.mxu0 %v713
        %760 = vmatprep.subr.mxu0 0.0
        %761 = vmatpush1.msra.mxu0 %v712
        %762 = vmatprep.subr.mxu0 0.0
        %763 = vmatpush1.msra.mxu0 %v711
        %764 = vmatprep.subr.mxu0 0.0
        %765 = vmatpush2.msra.mxu0 0.0
        %766 = vmatprep.subr.mxu0 0.0
        %767 = vmatpush2.msra.mxu0 0.0
        %768 = vmatprep.subr.mxu0 0.0
        %769 = vmatpush2.msra.mxu0 0.0
        %770 = vmatprep.subr.mxu0 0.0
        %771 = vmatpush2.msra.mxu0 0.0
        %772 = vmatprep.subr.mxu0 0.0
        %773 = vmatpush2.msra.mxu0 0.0
        %774 = vmatprep.subr.mxu0 0.0
        %775 = vmatpush2.msra.mxu0 0.0
        %776 = vmatprep.subr.mxu0 0.0
        %777 = vmatpush2.msra.mxu0 0.0
        %778 = vmatprep.subr.mxu0 0.0
        %779 = vmatpush2.msra.mxu0 0.0
        %780 = vmatprep.subr.mxu0 0.0
        %781 = vmatpush2.msra.mxu0 0.0
        %782 = vmatprep.subr.mxu0 0.0
        %783 = vmatpush2.msra.mxu0 0.0
        %784 = vmatprep.subr.mxu0 0.0
        %785 = vmatpush2.msra.mxu0 0.0
        %786 = vmatprep.subr.mxu0 0.0
        %787 = vmatpush2.msra.mxu0 0.0
        %788 = vmatprep.subr.mxu0 0.0
        %789 = vmatpush2.msra.mxu0 0.0
        %790 = vmatprep.subr.mxu0 0.0
        %791 = vmatpush2.msra.mxu0 0.0
        %792 = vmatprep.subr.mxu0 0.0
        %793 = vmatpush2.msra.mxu0 0.0
        %794 = vmatprep.subr.mxu0 0.0
        %795 = vmatpush2.msra.mxu0 0.0
        %796 = vmatprep.mubr.f32.mxu0 0.0
        %797 = vmatmul.mubr.f32.gmra.mxu0 %v693
        %v798 = vpop.f32.mrf.mxu0
        %v799 = vadd.f32 %v731, %v798
        %v800 = vpop.f32.mrf.mxu0
        %801 = vdwg.mxu0
        %v802 = vld [vmem:[%s221 + $0xc] sm:$0x1]
        %v803 = vld [vmem:[%s221 + $0xd] sm:$0x1]
        %v804 = vrot.slane %v799, 4
        %v805 = vadd.f32 %v799, %v804
        %v806 = vrot.slane %v805, 2
        %v807 = vadd.f32 %v805, %v806
        %v808 = vrot.slane %v807, 1
        %v809 = vadd.f32 %v807, %v808
        %v810 = vmul.f32 %v809, %v235
        %v811 = vmul.f32 %v799, %v799
        %v812 = vrot.slane %v811, 4
        %v813 = vadd.f32 %v811, %v812
        %v814 = vrot.slane %v813, 2
        %v815 = vadd.f32 %v813, %v814
        %v816 = vrot.slane %v815, 1
        %v817 = vadd.f32 %v815, %v816
        %v818 = vmul.f32 %v817, %v235
        %v819 = vmul.f32 %v810, %v810
        %v820 = vsub.f32 %v818, %v819
        %v821 = vmax.f32 %v820, 0.0
        %v822 = vadd.f32 %v821, 1e-05
        %v823 = vrsqrt.pop %v822
        %v824 = vmul.f32 %v802, %v823
        %v825 = vmul.f32 %v810, %v824
        %v826 = vsub.f32 %v803, %v825
        %v827 = vlaneseq
        %v828 = vshrl.u32 %v827, 7
        %v829 = vsub.s32 0, %v828
        %v830 = vrot.slane %v824, %v829
        %v831 = vmul.f32 %v799, %v830
        %v832 = vlaneseq
        %v833 = vshrl.u32 %v832, 7
        %v834 = vsub.s32 0, %v833
        %v835 = vrot.slane %v826, %v834
        %v836 = vadd.f32 %v831, %v835
        %837 = vst [vmem:[%s225] sm:$0xff] %v836
        %p838 = scmp.lt.s32.totalorder %s17, 2
        %s839 = scalar_select %p838, %s17, 2
        %s840 = smul.addr %s839, 8
        %s841 = scalar_lea.vmem %s3, %s840
        // Predicated region
        $region37: #{net_timestep_forward.1} parent=31 // pred_check
          %p842 = pneg %p113
        $region38: #{net_timestep_forward.1} parent=31 // pred_check_branch
          %844 = sbr.rel (%p842) target = $region40
        $region39: #{net_timestep_forward.1} parent=31 // pred_region
          _
        $region40: #{net_timestep_forward.1} parent=31 // pred_fallthru
          _
      $region32: #{net_timestep_forward.1} parent=5 // pred_fallthru
        _
      %p845 = scmp.le.s32.totalorder 2, %s12
      // Predicated region
      $region41: #{net_timestep_forward.1} parent=5 // pred_check
        %p846 = pneg %p845
      $region42: #{net_timestep_forward.1} parent=5 // pred_check_branch
        %848 = sbr.rel (%p846) target = $region44
      $region43: #{net_timestep_forward.1} parent=5 // pred_region
        %s849 = ssub.s32 %s12, 2
        // Predicated region
        $region45: #{net_timestep_forward.1} parent=43 // pred_check
          %p850 = pneg %p119
        $region46: #{net_timestep_forward.1} parent=43 // pred_check_branch
          %852 = sbr.rel (%p850) target = $region48
        $region47: #{net_timestep_forward.1} parent=43 // pred_region
          %p853 = scmp.lt.s32.totalorder %s18, 2
          %s854 = scalar_select %p853, %s18, 2
          %s855 = smul.addr %s854, 8
          %s856 = scalar_lea.vmem %s3, %s855
        $region48: #{net_timestep_forward.1} parent=43 // pred_fallthru
          _
      $region44: #{net_timestep_forward.1} parent=5 // pred_fallthru
        _
    $region6: #{net_timestep_forward.1} parent=1 // loop_footer
      %s16 = sadd.s32 1, %s12
    $region7: #{net_timestep_forward.1} parent=1 // loop_footer_branch
      %11 = sbr.rel target = $region3
    $region8: #{net_timestep_forward.1} parent=1 // loop_exit
      _
    %857 = vsyncpa [#allocation3], 1
    %s858 = scalar_lea.sflag [#allocation3], 1
    %859 = vsyncpa %s858, 1

</llo_original>
